<compile_context>
chip_gen: v7x
topology: tpu7x:2x2x1
jax: 0.10.0
libtpu: 0.0.40
codegen_flags: <defaults>
</compile_context>

<pallas_src>
import jax
import jax.numpy as jnp
from jax.experimental import pallas as pl
from jax.experimental.pallas import tpu as pltpu


# ---------------------------------------------------------------------------
# Tiny attention MLP (plain JAX): (B,Cin)@(Cin,Cmid)@(Cmid,Cout) is far below
# MXU tile size; a dedicated pallas_call only adds a launch (perf review).
# ---------------------------------------------------------------------------
def _compute_att(deg, w1, w2):
    h = jnp.dot(deg, w1, preferred_element_type=jnp.float32)   # (B, C_mid)
    h = jnp.where(h >= 0, h, 0.1 * h)                          # LeakyReLU(0.1)
    a = jnp.dot(h, w2, preferred_element_type=jnp.float32)     # (B, C_out)
    return jax.nn.sigmoid(a)


# ---------------------------------------------------------------------------
# Hot loop: HBM-bound broadcast multiply, tiled over (B, HW tiles)
# ---------------------------------------------------------------------------
def _scale_kernel(att_ref, x_ref, o_ref):
    # att_ref: (1, C, 1); x_ref / o_ref: (1, C, T), all already in feat dtype.
    # Per-channel scale -> cheap lane splat; no MXU work, no convert in-loop.
    o_ref[...] = x_ref[...] * att_ref[...]


def _tpu_vmem_capacity_bytes():
    # Trace-time hardware query; fall back conservatively if unavailable.
    try:
        return int(pltpu.get_tpu_info().vmem_capacity_bytes)
    except Exception:
        return None


def _choose_lane_tile(hw, c_out, itemsize, batch, target_block_bytes, min_grid_items):
    """Lane tile (multiple of 128) for the (1, C, T) streaming block."""
    if hw <= 128:
        return hw                                   # single full-extent tile
    n_units = pl.cdiv(hw, 128)                      # 128-lane groups in HW
    bytes_per_lane = c_out * itemsize
    # Target ~target_block_bytes per block (HBM-roofline sweet spot), lane-rounded.
    t_target = (target_block_bytes // bytes_per_lane // 128) * 128
    t_target = max(128, min(n_units * 128, int(t_target)))
    n_tiles = pl.cdiv(hw, t_target)
    # Keep >= min_grid_items work items so v7x's two TensorCores both get work
    # even at small batch (both grid axes are "parallel").
    if batch * n_tiles < min_grid_items:
        want = pl.cdiv(min_grid_items, max(batch, 1))
        n_tiles = min(n_units, max(n_tiles, want))
    # Even split of the HW axis (no sliver residue tile), rounded to 128 lanes.
    return pl.cdiv(pl.cdiv(hw, n_tiles), 128) * 128


def ca_layer(feat, deg, w1, w2, *, use_pallas=None, target_block_bytes=None,
             min_grid_items=4):
    """CA_layer forward.

    feat: (B, C_out, H, W); deg: (B, C_in); w1: (C_in, C_mid); w2: (C_mid, C_out)
    (w1/w2 are the PyTorch 1x1-conv [out, in] weights transposed to [in, out]).
    """
    B, C_out, H, W = feat.shape
    HW = H * W
    itemsize = jnp.dtype(feat.dtype).itemsize

    # Pre-cast att to the feature dtype: the big stream stays in feat dtype and
    # there is no per-grid-step convert inside the kernel (perf review).
    att = _compute_att(deg, w1, w2).astype(feat.dtype)          # (B, C_out)

    if use_pallas is None:
        # Tiny maps: launch overhead + masked sub-128-lane stores lose to XLA fusion.
        use_pallas = (HW >= 512) and (B * C_out * HW * itemsize >= (2 << 20))
    if not use_pallas:
        return feat * att[:, :, None, None]

    # --- chip-aware block budget -------------------------------------------
    vmem_cap = _tpu_vmem_capacity_bytes()
    big_vmem = vmem_cap is not None and vmem_cap >= (100 << 20)   # v5e/v6e: 128 MiB
    if target_block_bytes is None:
        # ~1-4 MiB blocks reach the HBM-roofline plateau everywhere; on the
        # 128-MiB-VMEM parts go larger (single TC, VMEM is not the constraint).
        target_block_bytes = (8 << 20) if big_vmem else (2 << 20)
    vmem_ceiling = (64 << 20) if big_vmem else (44 << 20)   # headroom vs v7x's 64 MiB

    x = feat.reshape(B, C_out, HW)
    att3 = att.reshape(B, C_out, 1)

    T = _choose_lane_tile(HW, C_out, itemsize, B, target_block_bytes, min_grid_items)
    n_tiles = pl.cdiv(HW, T)

    # VMEM budget: 2x in + 2x out (double buffering) + att + compiler scratch
    # headroom.  Only ever raised above the platform default (floor 32 MiB),
    # never right up against v7x's 64 MiB physical VMEM.
    block_bytes = C_out * T * itemsize
    vmem_bytes = int(min(vmem_ceiling, max(32 << 20, 6 * block_bytes + (2 << 20))))

    # NOTE: if xprof ever shows exposed DMA at tile boundaries on v5e, add
    #   pipeline_mode=pl.Buffered(3) to the x BlockSpec and bump the budget to
    #   ~7x block.  input_output_aliases={1: 0} would donate x into the output
    #   (capacity-only win); left off to keep feat live for the caller.
    out = pl.pallas_call(
        _scale_kernel,
        out_shape=jax.ShapeDtypeStruct((B, C_out, HW), feat.dtype),
        grid_spec=pltpu.PrefetchScalarGridSpec(
            num_scalar_prefetch=0,
            grid=(B, n_tiles),          # B outer, HW tiles inner: att is only
            in_specs=[                  # re-DMA'd when b changes, not per tile.
                pl.BlockSpec((1, C_out, 1), lambda b, j: (b, 0, 0)),
                pl.BlockSpec((1, C_out, T), lambda b, j: (b, 0, j)),
            ],
            out_specs=pl.BlockSpec((1, C_out, T), lambda b, j: (b, 0, j)),
        ),
        compiler_params=pltpu.CompilerParams(
            dimension_semantics=("parallel", "parallel"),
            vmem_limit_bytes=vmem_bytes,
        ),
    )(att3, x)

    return out.reshape(B, C_out, H, W)


# ---------------------------------------------------------------------------
# Pure-JAX reference
# ---------------------------------------------------------------------------
def ca_layer_ref(feat, deg, w1, w2):
    h = deg @ w1
    h = jnp.where(h >= 0, h, 0.1 * h)
    att = jax.nn.sigmoid(h @ w2)                  # (B, C_out)
    return feat * att[:, :, None, None]


if __name__ == "__main__":
    key = jax.random.PRNGKey(0)

    def make_case(key, B, C_in, C_out, reduction, H, W):
        C_mid = C_in // reduction
        k_feat, k_deg, k_w1, k_w2, key = jax.random.split(key, 5)
        feat = jax.random.normal(k_feat, (B, C_out, H, W), dtype=jnp.float32)
        deg = jax.random.normal(k_deg, (B, C_in), dtype=jnp.float32)
        # PyTorch Conv2d 1x1 weights are [out, in]; store transposed as [in, out].
        w1 = (jax.random.normal(k_w1, (C_mid, C_in), dtype=jnp.float32) * 0.1).T
        w2 = (jax.random.normal(k_w2, (C_out, C_mid), dtype=jnp.float32) * 0.1).T
        return key, (feat, deg, w1, w2)

    # Case 1: module-consistent small shapes (B=2, C=4, reduction=2, 16x16).
    # Force the Pallas path so the kernel itself is exercised.
    key, (feat, deg, w1, w2) = make_case(key, 2, 4, 4, 2, 16, 16)
    out = jax.block_until_ready(ca_layer(feat, deg, w1, w2, use_pallas=True))
    ref = ca_layer_ref(feat, deg, w1, w2)
    assert out.shape == feat.shape
    assert jnp.allclose(out, ref, atol=1e-5, rtol=1e-5)

    # Case 2: even-split tiled path (HW = 2304 splits into 2 x 1152 lanes, C % 8 == 0).
    key, (feat2, deg2, w1b, w2b) = make_case(key, 2, 8, 8, 2, 48, 48)
    out2 = jax.block_until_ready(ca_layer(feat2, deg2, w1b, w2b, use_pallas=True))
    ref2 = ca_layer_ref(feat2, deg2, w1b, w2b)
    assert out2.shape == feat2.shape
    assert jnp.allclose(out2, ref2, atol=1e-5, rtol=1e-5)

    # Case 3: B=1 exercises the min-grid-items logic plus a masked partial last tile.
    key, (feat3, deg3, w1c, w2c) = make_case(key, 1, 8, 8, 2, 40, 40)
    out3 = jax.block_until_ready(ca_layer(feat3, deg3, w1c, w2c, use_pallas=True))
    ref3 = ca_layer_ref(feat3, deg3, w1c, w2c)
    assert out3.shape == feat3.shape
    assert jnp.allclose(out3, ref3, atol=1e-5, rtol=1e-5)

    # Case 4: default dispatch on a tiny map takes the plain-JAX fallback.
    key, (feat4, deg4, w1d, w2d) = make_case(key, 2, 4, 4, 2, 8, 8)
    out4 = jax.block_until_ready(ca_layer(feat4, deg4, w1d, w2d))
    ref4 = ca_layer_ref(feat4, deg4, w1d, w2d)
    assert out4.shape == feat4.shape
    assert jnp.allclose(out4, ref4, atol=1e-5, rtol=1e-5)

    print("KERNEL_OK")
</pallas_src>

<mosaic_0001>
module attributes {stable_mosaic.version = 11 : i64} {
  func.func @_scale_kernel(%arg0: i32, %arg1: i32, %arg2: memref<1x4x1xf32, #tpu.memory_space<vmem>>, %arg3: memref<1x4x128xf32, #tpu.memory_space<vmem>>, %arg4: memref<1x4x128xf32, #tpu.memory_space<vmem>>) attributes {dimension_semantics = [#tpu.dimension_semantics<parallel>, #tpu.dimension_semantics<parallel>], iteration_bounds = array<i64: 2, 2>, scalar_prefetch = 0 : i64, scratch_operands = 0 : i64, tpu.core_type = #tpu.core_type<tc>, window_params = [{transform_indices = @transform_0, window_bounds = array<i64: 1, 4, 1>}, {transform_indices = @transform_1, window_bounds = array<i64: 1, 4, 128>}, {transform_indices = @transform_2, window_bounds = array<i64: 1, 4, 128>}]} {
    %c0 = arith.constant 0 : index
    %c0_0 = arith.constant 0 : index
    %c0_1 = arith.constant 0 : index
    %0 = vector.load %arg3[%c0, %c0_0, %c0_1] : memref<1x4x128xf32, #tpu.memory_space<vmem>>, vector<1x4x128xf32>
    %c0_2 = arith.constant 0 : index
    %c0_3 = arith.constant 0 : index
    %c0_4 = arith.constant 0 : index
    %1 = vector.load %arg2[%c0_2, %c0_3, %c0_4] : memref<1x4x1xf32, #tpu.memory_space<vmem>>, vector<1x4x1xf32>
    %2 = vector.broadcast %1 : vector<1x4x1xf32> to vector<1x4x128xf32>
    %3 = arith.mulf %0, %2 : vector<1x4x128xf32>
    %c0_5 = arith.constant 0 : index
    %c0_6 = arith.constant 0 : index
    %c0_7 = arith.constant 0 : index
    %4 = vector.load %arg4[%c0_5, %c0_6, %c0_7] : memref<1x4x128xf32, #tpu.memory_space<vmem>>, vector<1x4x128xf32>
    tpu.vector_store %arg4[%c0_5, %c0_6, %c0_7], %3 {strides = array<i32>} : memref<1x4x128xf32, #tpu.memory_space<vmem>>, vector<1x4x128xf32>,
    return
  }
  func.func @transform_0(%arg0: i32, %arg1: i32) -> (i32, i32, i32) {
    %c0_i32 = arith.constant 0 : i32
    %c0_i32_0 = arith.constant 0 : i32
    %c0_i32_1 = arith.constant 0 : i32
    return %arg0, %c0_i32, %c0_i32_0 : i32, i32, i32
  }
  func.func @transform_1(%arg0: i32, %arg1: i32) -> (i32, i32, i32) {
    %c0_i32 = arith.constant 0 : i32
    %c0_i32_0 = arith.constant 0 : i32
    return %arg0, %c0_i32, %arg1 : i32, i32, i32
  }
  func.func @transform_2(%arg0: i32, %arg1: i32) -> (i32, i32, i32) {
    %c0_i32 = arith.constant 0 : i32
    %c0_i32_0 = arith.constant 0 : i32
    return %arg0, %c0_i32, %arg1 : i32, i32, i32
  }
}

</mosaic_0001>

<llo_original>
// kernel: tpu_custom_call.1
$region0: #{tpu_custom_call.1}
  #allocation0 [shape = 'u32[]', space=smem, size = 0x4, offset = 0x4, fixed_abs, tag = 'smem constant byte address 0x4 - core index']
  #allocation1 [shape = 'u32[144,128]{1,0:T(1,128)}', space=vmem, size = 0x12000, scoped, tag = 'internal scratch']
  %s0 = inlined_call_operand.vmem [shape: f32[2,4,1], index: 0, kind: input, shape index: {}]
  %s1 = inlined_call_operand.hbm [shape: f32[2,4,256], index: 1, kind: input, shape index: {}]
  %s2 = inlined_call_operand.hbm [shape: f32[2,4,256], index: 2, kind: output, shape index: {}]
  %s3 = sld [smem:[#allocation0]]
  $region45: #{tpu_custom_call.1} parent=0
    _
  %s5 = ssub.s32 1, %s3
  %s6 = scalar_select 0, %s5, %s3
  $region1: #{tpu_custom_call.1} parent=0
    #allocation2 [shape = 'u8[4096]{0}', space=vmem, size = 0x1000, scoped, tag = 'input window, operand 1']
    #allocation3 [shape = 's32[2]{0}', space=sflag, size = 0x8, scoped, tag = 'scoped memory for tpu_custom_call.1']
    #allocation4 [shape = 's32[2]{0}', space=sflag, size = 0x8, scoped, tag = 'scoped memory for tpu_custom_call.1']
    #allocation5 [shape = 'u8[4096]{0}', space=vmem, size = 0x1000, scoped, tag = 'output window, operand 0']
    %7 = vsyncpa [#allocation3], 0
    %s8 = scalar_lea.sflag [#allocation3], 1
    %9 = vsyncpa %s8, 0
    %10 = vsyncpa [#allocation4], 0
    %s11 = scalar_lea.sflag [#allocation4], 1
    %12 = vsyncpa %s11, 0
    loop: start=0, step=1, limit=6
    $region2: #{tpu_custom_call.1} parent=1 // loop_pre_header
      _
    $region3: #{tpu_custom_call.1} parent=1 // loop_header
      %s14 = sphi 0, %s18
      %p15 = scmp.ge.s32.totalorder %s14, 6
      %s21 = sphi 0, %s33
      %s22 = sphi 0, %s29
      %s23 = sphi 0, %s21
      %s24 = sphi 0, %s22
      %s25 = sphi 0, %s23
      %s26 = sphi 0, %s24
      %s36 = sphi 0, %s38
      %s39 = sphi 0, %s36
      %s40 = sphi 0, %s39
      %s56 = sphi 0, %s40
      %s64 = sphi 0, %s66
      %s67 = sphi 0, %s64
      %s68 = sphi 0, %s67
      %s84 = sphi 0, %s68
      %s92 = sphi 0, %s94
      %s95 = sphi 0, %s92
      %s96 = sphi 0, %s95
      %s112 = sphi 0, %s96
    $region4: #{tpu_custom_call.1} parent=1 // loop_header_branch
      %17 = sbr.rel (%p15) target = $region8
    $region5: #{tpu_custom_call.1} parent=1 // loop_body
      %s19 = ssub.s32 %s14, 1
      %s20 = ssub.s32 %s14, 2
      %s27 = sadd.s32 1, %s22
      %p28 = scmp.ge.s32.totalorder %s27, 2
      %s29 = scalar_select %p28, 0, %s27
      %s30 = sadd.s32 1, %s21
      %s31 = scalar_select %p28, %s30, %s21
      %p32 = scmp.ge.s32.totalorder %s31, 2
      %s33 = scalar_select %p32, 0, %s31
      %s34 = ssub.s32 %s21, %s33
      %p35 = scmp.eq.s32.totalorder %s34, 0
      %s37 = sadd.s32 %s36, 1
      %s38 = scalar_select %p35, %s36, %s37
      %p41 = pneg %p35
      %p42 = scmp.eq.s32.totalorder %s14, 3
      %p43 = por %p41, %p42
      %p44 = scmp.ne.s32.totalorder %s36, %s39
      %p45 = scmp.eq.s32.totalorder %s14, 0
      %p46 = por %p44, %p45
      %p47 = scmp.ne.s32.totalorder %s36, %s39
      %p48 = scmp.eq.s32.totalorder %s19, 3
      %p49 = por %p47, %p48
      %p50 = scmp.ne.s32.totalorder %s39, %s40
      %p51 = scmp.eq.s32.totalorder %s19, 0
      %p52 = por %p50, %p51
      %p53 = scmp.ne.s32.totalorder %s39, %s40
      %p54 = scmp.eq.s32.totalorder %s20, 3
      %p55 = por %p53, %p54
      %p57 = scmp.ne.s32.totalorder %s40, %s56
      %p58 = scmp.eq.s32.totalorder %s20, 0
      %p59 = por %p57, %p58
      %s60 = ssub.s32 %s21, %s33
      %s61 = ssub.s32 %s22, %s29
      %s62 = sor.u32 %s60, %s61
      %p63 = scmp.eq.s32.totalorder %s62, 0
      %s65 = sadd.s32 %s64, 1
      %s66 = scalar_select %p63, %s64, %s65
      %p69 = pneg %p63
      %p70 = scmp.eq.s32.totalorder %s14, 3
      %p71 = por %p69, %p70
      %p72 = scmp.ne.s32.totalorder %s64, %s67
      %p73 = scmp.eq.s32.totalorder %s14, 0
      %p74 = por %p72, %p73
      %p75 = scmp.ne.s32.totalorder %s64, %s67
      %p76 = scmp.eq.s32.totalorder %s19, 3
      %p77 = por %p75, %p76
      %p78 = scmp.ne.s32.totalorder %s67, %s68
      %p79 = scmp.eq.s32.totalorder %s19, 0
      %p80 = por %p78, %p79
      %p81 = scmp.ne.s32.totalorder %s67, %s68
      %p82 = scmp.eq.s32.totalorder %s20, 3
      %p83 = por %p81, %p82
      %p85 = scmp.ne.s32.totalorder %s68, %s84
      %p86 = scmp.eq.s32.totalorder %s20, 0
      %p87 = por %p85, %p86
      %s88 = ssub.s32 %s21, %s33
      %s89 = ssub.s32 %s22, %s29
      %s90 = sor.u32 %s88, %s89
      %p91 = scmp.eq.s32.totalorder %s90, 0
      %s93 = sadd.s32 %s92, 1
      %s94 = scalar_select %p91, %s92, %s93
      %p97 = pneg %p91
      %p98 = scmp.eq.s32.totalorder %s14, 3
      %p99 = por %p97, %p98
      %p100 = scmp.ne.s32.totalorder %s92, %s95
      %p101 = scmp.eq.s32.totalorder %s14, 0
      %p102 = por %p100, %p101
      %p103 = scmp.ne.s32.totalorder %s92, %s95
      %p104 = scmp.eq.s32.totalorder %s19, 3
      %p105 = por %p103, %p104
      %p106 = scmp.ne.s32.totalorder %s95, %s96
      %p107 = scmp.eq.s32.totalorder %s19, 0
      %p108 = por %p106, %p107
      %p109 = scmp.ne.s32.totalorder %s95, %s96
      %p110 = scmp.eq.s32.totalorder %s20, 3
      %p111 = por %p109, %p110
      %p113 = scmp.ne.s32.totalorder %s96, %s112
      %p114 = scmp.eq.s32.totalorder %s20, 0
      %p115 = por %p113, %p114
      %p116 = scmp.le.s32.totalorder 1, %s14
      %p117 = scmp.lt.s32.totalorder %s14, 5
      %p118 = pnand %p116, %p117
      %p119 = pneg %p118
      // Predicated region
      $region9: #{tpu_custom_call.1} parent=5 // pred_check
        _
      $region10: #{tpu_custom_call.1} parent=5 // pred_check_branch
        %121 = sbr.rel (%p118) target = $region12
      $region11: #{tpu_custom_call.1} parent=5 // pred_region
        %s122 = ssub.s32 %s14, 1
      $region12: #{tpu_custom_call.1} parent=5 // pred_fallthru
        _
      %p123 = scmp.lt.s32.totalorder %s14, 4
      // Predicated region
      $region13: #{tpu_custom_call.1} parent=5 // pred_check
        %p124 = pneg %p123
      $region14: #{tpu_custom_call.1} parent=5 // pred_check_branch
        %126 = sbr.rel (%p124) target = $region16
      $region15: #{tpu_custom_call.1} parent=5 // pred_region
        // Predicated region
        $region17: #{tpu_custom_call.1} parent=15 // pred_check
          %p127 = pneg %p46
        $region18: #{tpu_custom_call.1} parent=15 // pred_check_branch
          %129 = sbr.rel (%p127) target = $region20
        $region19: #{tpu_custom_call.1} parent=15 // pred_region
          %p130 = scmp.lt.s32.totalorder %s21, 1
          %s131 = scalar_select %p130, %s21, 1
          %s132 = smul.addr %s131, 4
          %s133 = scalar_lea.vmem %s0, %s132
        $region20: #{tpu_custom_call.1} parent=15 // pred_fallthru
          _
        // Predicated region
        $region21: #{tpu_custom_call.1} parent=15 // pred_check
          %p134 = pneg %p74
        $region22: #{tpu_custom_call.1} parent=15 // pred_check_branch
          %136 = sbr.rel (%p134) target = $region24
        $region23: #{tpu_custom_call.1} parent=15 // pred_region
          %s137 = sand.u32 %s64, 1
          %s138 = scalar_lea.sflag [#allocation3], %s137
          %s139 = sand.u32 %s64, 1
          %s140 = smul.addr %s139, 4
          %s141 = scalar_lea.vmem [#allocation2], %s140
          %s143 = ssub.s32 64, 64
          %144 = vsyncadd %s138, %s143
          %s145 = smul.addr %s21, 2
          %s146 = sadd.s32 %s22, %s145
          %s147 = smul.addr %s146, 64
          %s148 = scalar_lea.hbm %s1, %s147
          %s150 = sshll.u32 %s141, 4
          %s151 = int_to_ptr.vmem [resolvable:$true] %s150
          %153 = dma.hbm_to_vmem [thread:$0]  %s148, 64, %s151, %s138
        $region24: #{tpu_custom_call.1} parent=15 // pred_fallthru
          _
      $region16: #{tpu_custom_call.1} parent=5 // pred_fallthru
        _
      %p154 = scmp.le.s32.totalorder 1, %s14
      %p155 = scmp.lt.s32.totalorder %s14, 5
      %p156 = pnand %p154, %p155
      %p157 = pneg %p156
      // Predicated region
      $region25: #{tpu_custom_call.1} parent=5 // pred_check
        _
      $region26: #{tpu_custom_call.1} parent=5 // pred_check_branch
        %159 = sbr.rel (%p156) target = $region28
      $region27: #{tpu_custom_call.1} parent=5 // pred_region
        %s160 = ssub.s32 %s14, 1
        %s161 = sand.u32 %s67, 1
        %s162 = scalar_lea.sflag [#allocation3], %s161
        %s163 = sand.u32 %s67, 1
        %s164 = smul.addr %s163, 4
        %s165 = scalar_lea.vmem [#allocation2], %s164
        // Predicated region
        $region29: #{tpu_custom_call.1} parent=27 // pred_check
          %p166 = pneg %p80
        $region30: #{tpu_custom_call.1} parent=27 // pred_check_branch
          %168 = sbr.rel (%p166) target = $region32
        $region31: #{tpu_custom_call.1} parent=27 // pred_region
          %169 = dma.done %s162, 64
        $region32: #{tpu_custom_call.1} parent=27 // pred_fallthru
          _
        %p170 = scmp.lt.s32.totalorder %s23, 1
        %s171 = scalar_select %p170, %s23, 1
        %s172 = smul.addr %s171, 4
        %s173 = scalar_lea.vmem %s0, %s172
        %p174 = pneg %p52
        %p175 = pneg %p49
        %s176 = sand.u32 %s67, 1
        %s177 = scalar_lea.sflag [#allocation3], %s176
        %s178 = sand.u32 %s67, 1
        %s179 = smul.addr %s178, 4
        %s180 = scalar_lea.vmem [#allocation2], %s179
        %p181 = pneg %p80
        %p182 = pneg %p77
        %p183 = pneg %p108
        %p184 = pneg %p105
        %s185 = sand.u32 %s95, 1
        %s186 = scalar_lea.sflag [#allocation4], %s185
        %s187 = sand.u32 %s95, 1
        %s188 = smul.addr %s187, 4
        %s189 = scalar_lea.vmem [#allocation5], %s188
        %p190 = scmp.lt.s32.totalorder %s23, 1
        %s191 = scalar_select %p190, %s23, 1
        %s192 = smul.addr %s191, 4
        %s193 = scalar_lea.vmem %s0, %s192
        %v194 = vld [vmem:[%s165] sm:$0xf]
        %v195 = vld [vmem:[%s193] sm:$0xf]
        %197 = vset.pattern.permute.xlu0 0
        %198 = vperm.xlu0 %197, %v195
        %v199 = vpop.permute.xlu0 %198
        %v201 = vmul.f32 %v194, %v199
        %202 = vst [vmem:[%s189] sm:$0xf] %v201
        %s203 = sand.u32 %s95, 1
        %s204 = scalar_lea.sflag [#allocation4], %s203
        %s205 = sand.u32 %s95, 1
        %s206 = smul.addr %s205, 4
        %s207 = scalar_lea.vmem [#allocation5], %s206
        // Predicated region
        $region33: #{tpu_custom_call.1} parent=27 // pred_check
          %p208 = pneg %p105
        $region34: #{tpu_custom_call.1} parent=27 // pred_check_branch
          %210 = sbr.rel (%p208) target = $region36
        $region35: #{tpu_custom_call.1} parent=27 // pred_region
          %s212 = ssub.s32 64, 64
          %213 = vsyncadd %s204, %s212
          %s214 = smul.addr %s23, 2
          %s215 = sadd.s32 %s24, %s214
          %s216 = smul.addr %s215, 64
          %s217 = scalar_lea.hbm %s2, %s216
          %s219 = sshll.u32 %s207, 4
          %s220 = int_to_ptr.vmem [resolvable:$true] %s219
          %222 = dma.vmem_to_hbm [thread:$0]  %s220, 64, %s217, %s204
        $region36: #{tpu_custom_call.1} parent=27 // pred_fallthru
          _
      $region28: #{tpu_custom_call.1} parent=5 // pred_fallthru
        _
      %p223 = scmp.le.s32.totalorder 2, %s14
      // Predicated region
      $region37: #{tpu_custom_call.1} parent=5 // pred_check
        %p224 = pneg %p223
      $region38: #{tpu_custom_call.1} parent=5 // pred_check_branch
        %226 = sbr.rel (%p224) target = $region40
      $region39: #{tpu_custom_call.1} parent=5 // pred_region
        %s227 = ssub.s32 %s14, 2
        // Predicated region
        $region41: #{tpu_custom_call.1} parent=39 // pred_check
          %p228 = pneg %p111
        $region42: #{tpu_custom_call.1} parent=39 // pred_check_branch
          %230 = sbr.rel (%p228) target = $region44
        $region43: #{tpu_custom_call.1} parent=39 // pred_region
          %s231 = sand.u32 %s96, 1
          %s232 = scalar_lea.sflag [#allocation4], %s231
          %s233 = sand.u32 %s96, 1
          %s234 = smul.addr %s233, 4
          %s235 = scalar_lea.vmem [#allocation5], %s234
          %236 = dma.done %s232, 64
        $region44: #{tpu_custom_call.1} parent=39 // pred_fallthru
          _
      $region40: #{tpu_custom_call.1} parent=5 // pred_fallthru
        _
    $region6: #{tpu_custom_call.1} parent=1 // loop_footer
      %s18 = sadd.s32 1, %s14
    $region7: #{tpu_custom_call.1} parent=1 // loop_footer_branch
      %13 = sbr.rel target = $region3
    $region8: #{tpu_custom_call.1} parent=1 // loop_exit
      _
    %237 = vsyncpa [#allocation3], 1
    %s238 = scalar_lea.sflag [#allocation3], 1
    %239 = vsyncpa %s238, 1
    %240 = vsyncpa [#allocation4], 1
    %s241 = scalar_lea.sflag [#allocation4], 1
    %242 = vsyncpa %s241, 1

</llo_original>
